<compile_context>
chip_gen: v7x
topology: tpu7x:2x2x1
jax: 0.10.0
libtpu: 0.0.40
codegen_flags: <defaults>
</compile_context>

<pallas_src>
import math
import functools

import jax
import jax.numpy as jnp
from jax import lax
from jax.experimental import pallas as pl
from jax.experimental.pallas import tpu as pltpu

_NORM_EPS = 1e-12    # F.normalize eps
_COSSIM_EPS = 1e-8   # F.cosine_similarity eps


def _pick_class_tile(C, max_tile=512):
    """Largest multiple of 128 that divides C (capped); fall back to C itself."""
    best = None
    t = 128
    while t <= min(C, max_tile):
        if C % t == 0:
            best = t
        t += 128
    return best if best is not None else C


# ---------------------------------------------------------------------------
# Kernel A: per class-tile: normalize + MXU matmul + fused per-class cos-sim stat
# ---------------------------------------------------------------------------
def _cos_stats_kernel(emb_ref, w_ref, ctr_ref, cos_ref, sim_ref, *, compute_dtype):
    emb = emb_ref[...]                          # (B, D)  f32, resident across tiles
    w = w_ref[...]                              # (TC, D) f32, streamed per tile
    ctr = ctr_ref[...]                          # (TC, D) f32, streamed per tile

    # F.normalize(x, p=2, dim=1, eps=1e-12):  x * min(rsqrt(sum x^2), 1/eps)
    # rsqrt goes to the EUP slot (free vs per-element divides on the VPU).
    e_inv = jnp.minimum(lax.rsqrt(jnp.sum(emb * emb, axis=1, keepdims=True)),
                        1.0 / _NORM_EPS)
    w_ss = jnp.sum(w * w, axis=1, keepdims=True)                      # (TC, 1)
    w_inv = jnp.minimum(lax.rsqrt(w_ss), 1.0 / _NORM_EPS)

    emb_n = (emb * e_inv).astype(compute_dtype)
    w_n = (w * w_inv).astype(compute_dtype)

    # cos_theta tile = emb_n @ w_n^T (contract D) on the MXU, f32 accumulation.
    cos_ref[...] = lax.dot_general(emb_n, w_n, (((1,), (1,)), ((), ())),
                                   preferred_element_type=jnp.float32)

    # Fused per-class statistic: cosine_similarity(weight, updated center) with
    # the PyTorch eps semantics  dot / (max(||w||, eps) * max(||c||, eps)).
    wc = jnp.sum(w * ctr, axis=1, keepdims=True)                      # (TC, 1)
    wn = jnp.maximum(jnp.sqrt(w_ss), _COSSIM_EPS)
    cn = jnp.maximum(jnp.sqrt(jnp.sum(ctr * ctr, axis=1, keepdims=True)),
                     _COSSIM_EPS)
    sim_ref[...] = wc / (wn * cn)


# ---------------------------------------------------------------------------
# Kernel B: class-tiled online-softmax cross-entropy.
# The heavy margin math lives on (B, 1) in glue; here only one select/element.
# ---------------------------------------------------------------------------
def _loss_kernel(cos_ref, lab_ref, tfix_ref, loss_ref, m_sc, l_sc, *, s):
    i = pl.program_id(0)

    @pl.when(i == 0)
    def _():
        m_sc[...] = jnp.full_like(m_sc, -jnp.inf)
        l_sc[...] = jnp.zeros_like(l_sc)

    cos = cos_ref[...]                                    # (B, TC) f32
    B, TC = cos.shape
    cols = lax.broadcasted_iota(jnp.int32, (B, TC), 1) + i * TC
    is_tgt = cols == lab_ref[...]                         # (B, TC) vs (B, 1)

    # Logits: s*cos everywhere except the single per-row target column, which
    # gets the precomputed margined value s*cos_theta_m (broadcast from (B, 1)).
    logits = jnp.where(is_tgt, tfix_ref[...], cos * s)

    m_new = jnp.maximum(m_sc[...], jnp.max(logits, axis=1, keepdims=True))
    l_sc[...] = (l_sc[...] * jnp.exp(m_sc[...] - m_new)
                 + jnp.sum(jnp.exp(logits - m_new), axis=1, keepdims=True))
    m_sc[...] = m_new

    @pl.when(i == pl.num_programs(0) - 1)
    def _():
        lse = m_sc[...] + jnp.log(l_sc[...])              # (B, 1)
        per_row = lse - tfix_ref[...]
        loss_ref[...] = jnp.sum(per_row, axis=0, keepdims=True) / B


# ---------------------------------------------------------------------------
# Wrapper (functional: returns updated buffers instead of mutating them)
# ---------------------------------------------------------------------------
def centers_bias_face_forward(embeddings, label, weight, center, t_ada,
                              s=64.0, m=0.5, m_m=0.05, momentum=0.99,
                              constant_t=False, compute_dtype=jnp.bfloat16,
                              class_tile=512):
    B, D = embeddings.shape
    C = weight.shape[0]
    emb = embeddings.astype(jnp.float32)
    w = weight.astype(jnp.float32)
    ctr = center.astype(jnp.float32)
    lab = label.astype(jnp.int32)
    lab2 = lab.reshape(B, 1)

    # --- no-grad buffer update: center[label] = emb*(1-mom) + mom*center[label]
    # TODO(synk): duplicate labels keep only the last write (same as .at[].set);
    #   donate/alias the (C, D) center buffer under jit to avoid the scatter copy.
    new_rows = emb * (1.0 - momentum) + momentum * ctr[lab]
    center_new = ctr.at[lab].set(new_rows)

    TC = _pick_class_tile(C, class_tile)
    grid = (C // TC,)

    # ---- Kernel A: cos_theta tiles + fused per-class cos-sim statistic ----
    cos_theta, cossim = pl.pallas_call(
        functools.partial(_cos_stats_kernel, compute_dtype=compute_dtype),
        grid=grid,
        in_specs=[
            pl.BlockSpec((B, D), lambda i: (0, 0)),      # embeddings: resident
            pl.BlockSpec((TC, D), lambda i: (i, 0)),     # weight tile (streamed)
            pl.BlockSpec((TC, D), lambda i: (i, 0)),     # updated center tile
        ],
        out_specs=(
            pl.BlockSpec((B, TC), lambda i: (0, i)),     # cos_theta tile
            pl.BlockSpec((TC, 1), lambda i: (i, 0)),     # per-class cos-sim
        ),
        out_shape=(jax.ShapeDtypeStruct((B, C), jnp.float32),
                   jax.ShapeDtypeStruct((C, 1), jnp.float32)),
        compiler_params=pltpu.CompilerParams(
            dimension_semantics=("parallel",)),
    )(emb, w, center_new)

    # ---- tiny no-grad statistics (B- and C-sized, plain JAX glue) ----
    target_cos = jnp.take_along_axis(cos_theta, lab2, axis=1)        # (B, 1)

    # t_ada EMA (sum of target cosines / count of nonzero, as in the reference)
    sum_cos = jnp.sum(target_cos)
    cnt = jnp.sum((target_cos != 0.0).astype(jnp.float32))
    update_value = sum_cos / cnt
    t_old = t_ada.reshape(()).astype(jnp.float32)
    t_new = update_value * (1.0 - momentum) + momentum * t_old
    t_used = jnp.float32(1.0) if constant_t else t_new

    # adaptive per-class margin from the fused hard-rate statistic
    # TODO(synk): (max - min) can be 0 -> NaN margins; mirrors the reference.
    hard_rate = 1.0 - cossim[:, 0]                                    # (C,)
    nhr = (hard_rate - hard_rate.min()) / (hard_rate.max() - hard_rate.min())
    margin = jnp.clip(m + nhr * t_used * m_m, m, m + m_m)             # (C,)

    # per-row margin application (only the target column ever needs it)
    marg_row = margin[lab][:, None]                                   # (B, 1)
    sin_t = jnp.sqrt(jnp.clip(1.0 - target_cos * target_cos, 0.0, 1.0))
    ctm = target_cos * jnp.cos(marg_row) - sin_t * jnp.sin(marg_row)
    th = jnp.cos(math.pi - marg_row)
    mmv = jnp.sin(math.pi - marg_row) * marg_row
    ctm = jnp.where(target_cos > th, ctm, target_cos - mmv)
    target_fix = (ctm * s).astype(jnp.float32)                        # (B, 1)

    # ---- Kernel B: class-tiled online-softmax cross entropy ----
    loss = pl.pallas_call(
        functools.partial(_loss_kernel, s=s),
        grid=grid,
        in_specs=[
            pl.BlockSpec((B, TC), lambda i: (0, i)),     # cos_theta tile
            pl.BlockSpec((B, 1), lambda i: (0, 0)),      # labels (resident)
            pl.BlockSpec((B, 1), lambda i: (0, 0)),      # margined target logit
        ],
        out_specs=pl.BlockSpec((1, 1), lambda i: (0, 0)),
        out_shape=jax.ShapeDtypeStruct((1, 1), jnp.float32),
        scratch_shapes=[pltpu.VMEM((B, 1), jnp.float32),   # running max
                        pltpu.VMEM((B, 1), jnp.float32)],  # running sum-exp
        compiler_params=pltpu.CompilerParams(
            dimension_semantics=("arbitrary",)),
    )(cos_theta, lab2, target_fix)[0, 0]

    return {
        'total_loss': loss,
        't': t_used,
        'm_mean': margin.mean(),
        'm_max': margin.max(),
        'm_min': margin.min(),
        'center': center_new,                 # updated buffer
        't_ada': jnp.reshape(t_new, (1,)),    # updated buffer
    }


# ---------------------------------------------------------------------------
# Pure-JAX reference (mirrors the PyTorch forward) for correctness checks
# ---------------------------------------------------------------------------
def _reference(embeddings, label, weight, center, t_ada,
               s=64.0, m=0.5, m_m=0.05, momentum=0.99, constant_t=False,
               compute_dtype=jnp.float32):
    def l2n(x):
        return x / jnp.maximum(
            jnp.sqrt(jnp.sum(x * x, axis=1, keepdims=True)), _NORM_EPS)

    C = weight.shape[0]
    cos = jnp.dot(l2n(embeddings).astype(compute_dtype),
                  l2n(weight).astype(compute_dtype).T,
                  precision=lax.Precision.HIGHEST,
                  preferred_element_type=jnp.float32)
    one_hot = jax.nn.one_hot(label, C, dtype=jnp.float32)
    center_new = center.at[label].set(
        embeddings * (1.0 - momentum) + momentum * center[label])

    target = one_hot * cos
    update_value = jnp.sum(target) / jnp.sum((target != 0.0).astype(jnp.float32))
    t_new = update_value * (1.0 - momentum) + momentum * t_ada
    t_used = 1.0 if constant_t else t_new[0]

    wn = jnp.maximum(jnp.sqrt(jnp.sum(weight * weight, axis=1)), _COSSIM_EPS)
    cn = jnp.maximum(jnp.sqrt(jnp.sum(center_new * center_new, axis=1)), _COSSIM_EPS)
    hard = 1.0 - jnp.sum(weight * center_new, axis=1) / (wn * cn)
    nhr = (hard - hard.min()) / (hard.max() - hard.min())
    margin = jnp.clip(m + nhr * t_used * m_m, m, m + m_m)[None, :]

    sin_theta = jnp.sqrt(jnp.clip(1.0 - cos * cos, 0.0, 1.0))
    ctm = cos * jnp.cos(margin) - sin_theta * jnp.sin(margin)
    th = jnp.cos(math.pi - margin)
    mmv = jnp.sin(math.pi - margin) * margin
    ctm = jnp.where(cos > th, ctm, cos - mmv)
    out = (one_hot * ctm + (1.0 - one_hot) * cos) * s

    lse = jax.scipy.special.logsumexp(out, axis=1)
    loss = jnp.mean(lse - jnp.sum(one_hot * out, axis=1))
    return loss, t_new


if __name__ == "__main__":
    key = jax.random.PRNGKey(0)
    B, D, C = 8, 64, 256   # batch, in_features, out_features (small test shapes)

    k_w, k_c, k_e, k_l = jax.random.split(key, 4)
    bound = math.sqrt(6.0 / (D + C))  # xavier_uniform for (C, D)
    weight = jax.random.uniform(k_w, (C, D), jnp.float32, -bound, bound)
    center = jax.random.uniform(k_c, (C, D), jnp.float32, -bound, bound)
    t_ada = jnp.zeros((1,), jnp.float32)
    embeddings = jax.random.normal(k_e, (B, D), jnp.float32)
    label = jax.random.permutation(k_l, C)[:B].astype(jnp.int32)  # unique labels

    # --- f32 MXU path (class_tile=128 -> 2 class tiles, exercises the grid) ---
    out32 = centers_bias_face_forward(embeddings, label, weight, center, t_ada,
                                      compute_dtype=jnp.float32, class_tile=128)
    out32 = jax.block_until_ready(out32)
    ref_loss32, ref_t32 = _reference(embeddings, label, weight, center, t_ada,
                                     compute_dtype=jnp.float32)
    assert jnp.isfinite(out32['total_loss'])
    assert jnp.allclose(out32['total_loss'], ref_loss32, rtol=2e-2, atol=2e-2), \
        (out32['total_loss'], ref_loss32)
    assert jnp.allclose(out32['t_ada'], ref_t32, rtol=5e-3, atol=2e-4), \
        (out32['t_ada'], ref_t32)

    # --- bf16 MXU path (default / recommended) vs bf16-matmul reference ---
    out16 = centers_bias_face_forward(embeddings, label, weight, center, t_ada,
                                      compute_dtype=jnp.bfloat16, class_tile=128)
    out16 = jax.block_until_ready(out16)
    ref_loss16, ref_t16 = _reference(embeddings, label, weight, center, t_ada,
                                     compute_dtype=jnp.bfloat16)
    assert jnp.isfinite(out16['total_loss'])
    assert jnp.allclose(out16['total_loss'], ref_loss16, rtol=2e-2, atol=2e-2), \
        (out16['total_loss'], ref_loss16)
    assert jnp.allclose(out16['t_ada'], ref_t16, rtol=2e-2, atol=1e-4), \
        (out16['t_ada'], ref_t16)

    print("KERNEL_OK")
</pallas_src>

<mosaic_0001>
module attributes {stable_mosaic.version = 11 : i64} {
  func.func @_cos_stats_kernel(%arg0: i32, %arg1: memref<8x64xf32, #tpu.memory_space<vmem>>, %arg2: memref<128x64xf32, #tpu.memory_space<vmem>>, %arg3: memref<128x64xf32, #tpu.memory_space<vmem>>, %arg4: memref<8x128xf32, #tpu.memory_space<vmem>>, %arg5: memref<128x1xf32, #tpu.memory_space<vmem>>) attributes {dimension_semantics = [#tpu.dimension_semantics<parallel>], iteration_bounds = array<i64: 2>, scalar_prefetch = 0 : i64, scratch_operands = 0 : i64, tpu.core_type = #tpu.core_type<tc>, window_params = [{pipeline_mode = #tpu.pipeline_mode<synchronous>, transform_indices = @transform_0, window_bounds = array<i64: 8, 64>}, {transform_indices = @transform_1, window_bounds = array<i64: 128, 64>}, {transform_indices = @transform_2, window_bounds = array<i64: 128, 64>}, {transform_indices = @transform_3, window_bounds = array<i64: 8, 128>}, {transform_indices = @transform_4, window_bounds = array<i64: 128, 1>}]} {
    %c0 = arith.constant 0 : index
    %c0_0 = arith.constant 0 : index
    %0 = vector.load %arg1[%c0, %c0_0] : memref<8x64xf32, #tpu.memory_space<vmem>>, vector<8x64xf32>
    %c0_1 = arith.constant 0 : index
    %c0_2 = arith.constant 0 : index
    %1 = vector.load %arg2[%c0_1, %c0_2] : memref<128x64xf32, #tpu.memory_space<vmem>>, vector<128x64xf32>
    %c0_3 = arith.constant 0 : index
    %c0_4 = arith.constant 0 : index
    %2 = vector.load %arg3[%c0_3, %c0_4] : memref<128x64xf32, #tpu.memory_space<vmem>>, vector<128x64xf32>
    %3 = arith.mulf %0, %0 : vector<8x64xf32>
    %cst = arith.constant dense<0.000000e+00> : vector<8xf32>
    %4 = vector.multi_reduction <add>, %3, %cst [1] : vector<8x64xf32> to vector<8xf32>
    %5 = vector.shape_cast %4 : vector<8xf32> to vector<8x1xf32>
    %6 = math.rsqrt %5 : vector<8x1xf32>
    %cst_5 = arith.constant 9.99999995E+11 : f32
    %7 = vector.broadcast %cst_5 : f32 to vector<8x1xf32>
    %8 = arith.minimumf %6, %7 : vector<8x1xf32>
    %9 = arith.mulf %1, %1 : vector<128x64xf32>
    %cst_6 = arith.constant dense<0.000000e+00> : vector<128xf32>
    %10 = vector.multi_reduction <add>, %9, %cst_6 [1] : vector<128x64xf32> to vector<128xf32>
    %11 = vector.shape_cast %10 : vector<128xf32> to vector<128x1xf32>
    %12 = math.rsqrt %11 : vector<128x1xf32>
    %cst_7 = arith.constant 9.99999995E+11 : f32
    %13 = vector.broadcast %cst_7 : f32 to vector<128x1xf32>
    %14 = arith.minimumf %12, %13 : vector<128x1xf32>
    %15 = vector.broadcast %8 : vector<8x1xf32> to vector<8x64xf32>
    %16 = arith.mulf %0, %15 : vector<8x64xf32>
    %17 = vector.broadcast %14 : vector<128x1xf32> to vector<128x64xf32>
    %18 = arith.mulf %1, %17 : vector<128x64xf32>
    %cst_8 = arith.constant dense<0.000000e+00> : vector<8x128xf32>
    %19 = tpu.matmul %16, %18, %cst_8 {dimension_numbers = #tpu.dot_dimension_numbers<[1], [1], [0], [0], [0, 0, 1, 0], [], []>} : vector<8x64xf32>, vector<128x64xf32>, vector<8x128xf32> -> vector<8x128xf32>
    %c0_9 = arith.constant 0 : index
    %c0_10 = arith.constant 0 : index
    %20 = vector.load %arg4[%c0_9, %c0_10] : memref<8x128xf32, #tpu.memory_space<vmem>>, vector<8x128xf32>
    tpu.vector_store %arg4[%c0_9, %c0_10], %19 {strides = array<i32>} : memref<8x128xf32, #tpu.memory_space<vmem>>, vector<8x128xf32>,
    %21 = arith.mulf %1, %2 : vector<128x64xf32>
    %cst_11 = arith.constant dense<0.000000e+00> : vector<128xf32>
    %22 = vector.multi_reduction <add>, %21, %cst_11 [1] : vector<128x64xf32> to vector<128xf32>
    %23 = vector.shape_cast %22 : vector<128xf32> to vector<128x1xf32>
    %24 = math.sqrt %11 : vector<128x1xf32>
    %cst_12 = arith.constant 9.99999993E-9 : f32
    %25 = vector.broadcast %cst_12 : f32 to vector<128x1xf32>
    %26 = arith.maximumf %24, %25 : vector<128x1xf32>
    %27 = arith.mulf %2, %2 : vector<128x64xf32>
    %cst_13 = arith.constant dense<0.000000e+00> : vector<128xf32>
    %28 = vector.multi_reduction <add>, %27, %cst_13 [1] : vector<128x64xf32> to vector<128xf32>
    %29 = vector.shape_cast %28 : vector<128xf32> to vector<128x1xf32>
    %30 = math.sqrt %29 : vector<128x1xf32>
    %cst_14 = arith.constant 9.99999993E-9 : f32
    %31 = vector.broadcast %cst_14 : f32 to vector<128x1xf32>
    %32 = arith.maximumf %30, %31 : vector<128x1xf32>
    %33 = arith.mulf %26, %32 : vector<128x1xf32>
    %34 = arith.divf %23, %33 : vector<128x1xf32>
    %c0_15 = arith.constant 0 : index
    %c0_16 = arith.constant 0 : index
    %35 = vector.load %arg5[%c0_15, %c0_16] : memref<128x1xf32, #tpu.memory_space<vmem>>, vector<128x1xf32>
    tpu.vector_store %arg5[%c0_15, %c0_16], %34 {strides = array<i32>} : memref<128x1xf32, #tpu.memory_space<vmem>>, vector<128x1xf32>,
    return
  }
  func.func @transform_0(%arg0: i32) -> (i32, i32) {
    %c0_i32 = arith.constant 0 : i32
    %c0_i32_0 = arith.constant 0 : i32
    %c0_i32_1 = arith.constant 0 : i32
    return %c0_i32, %c0_i32_0 : i32, i32
  }
  func.func @transform_1(%arg0: i32) -> (i32, i32) {
    %c0_i32 = arith.constant 0 : i32
    %c0_i32_0 = arith.constant 0 : i32
    return %arg0, %c0_i32 : i32, i32
  }
  func.func @transform_2(%arg0: i32) -> (i32, i32) {
    %c0_i32 = arith.constant 0 : i32
    %c0_i32_0 = arith.constant 0 : i32
    return %arg0, %c0_i32 : i32, i32
  }
  func.func @transform_3(%arg0: i32) -> (i32, i32) {
    %c0_i32 = arith.constant 0 : i32
    %c0_i32_0 = arith.constant 0 : i32
    return %c0_i32, %arg0 : i32, i32
  }
  func.func @transform_4(%arg0: i32) -> (i32, i32) {
    %c0_i32 = arith.constant 0 : i32
    %c0_i32_0 = arith.constant 0 : i32
    return %arg0, %c0_i32 : i32, i32
  }
}

</mosaic_0001>

<llo_original>
// kernel: tpu_custom_call.1
$region0: #{tpu_custom_call.1}
  #allocation0 [shape = 'u32[]', space=smem, size = 0x4, offset = 0x4, fixed_abs, tag = 'smem constant byte address 0x4 - core index']
  #allocation1 [shape = 'u32[144,128]{1,0:T(1,128)}', space=vmem, size = 0x12000, scoped, tag = 'internal scratch']
  %s0 = inlined_call_operand.vmem [shape: f32[8,64], index: 0, kind: input, shape index: {}]
  %s1 = inlined_call_operand.vmem [shape: f32[256,64], index: 1, kind: input, shape index: {}]
  %s2 = inlined_call_operand.vmem [shape: f32[256,64], index: 2, kind: input, shape index: {}]
  %s3 = inlined_call_operand.hbm [shape: f32[8,256], index: 3, kind: output, shape index: {0}]
  %s4 = inlined_call_operand.vmem [shape: f32[256,1], index: 4, kind: output, shape index: {1}]
  %5 = xla_tuple %s3, %s4
  %s6 = sld [smem:[#allocation0]]
  $region53: #{tpu_custom_call.1} parent=0
    _
  %s8 = ssub.s32 1, %s6
  %s9 = scalar_select 0, %s8, %s6
  $region1: #{tpu_custom_call.1} parent=0
    #allocation2 [shape = 'u8[8192]{0}', space=vmem, size = 0x2000, scoped, tag = 'output window, operand 0']
    #allocation3 [shape = 's32[2]{0}', space=sflag, size = 0x8, scoped, tag = 'scoped memory for tpu_custom_call.1']
    %10 = vsyncpa [#allocation3], 0
    %s11 = scalar_lea.sflag [#allocation3], 1
    %12 = vsyncpa %s11, 0
    loop: start=0, step=1, limit=4
    $region2: #{tpu_custom_call.1} parent=1 // loop_pre_header
      _
    $region3: #{tpu_custom_call.1} parent=1 // loop_header
      %s14 = sphi 0, %s18
      %p15 = scmp.ge.s32.totalorder %s14, 4
      %s22 = sphi 0, %s22
      %s24 = sphi 0, %s22
      %s25 = sphi 0, %s24
      %s39 = sphi 0, %s25
      %s45 = sphi 0, %s47
      %s48 = sphi 0, %s45
      %s49 = sphi 0, %s48
      %s65 = sphi 0, %s49
      %s71 = sphi 0, %s73
      %s74 = sphi 0, %s71
      %s75 = sphi 0, %s74
      %s91 = sphi 0, %s75
      %s97 = sphi 0, %s99
      %s100 = sphi 0, %s97
      %s101 = sphi 0, %s100
      %s117 = sphi 0, %s101
      %s123 = sphi 0, %s125
      %s126 = sphi 0, %s123
      %s127 = sphi 0, %s126
      %s143 = sphi 0, %s127
    $region4: #{tpu_custom_call.1} parent=1 // loop_header_branch
      %17 = sbr.rel (%p15) target = $region8
    $region5: #{tpu_custom_call.1} parent=1 // loop_body
      %s19 = ssub.s32 %s14, 1
      %s20 = ssub.s32 %s14, 2
      %s21 = sadd.s32 %s14, 1
      %s23 = sadd.s32 %s22, 1
      %p26 = scmp.eq.s32.totalorder %s14, 1
      %p27 = scmp.ne.s32.totalorder %s22, %s24
      %p28 = scmp.eq.s32.totalorder %s14, 0
      %p29 = por %p27, %p28
      %p30 = scmp.ne.s32.totalorder %s22, %s24
      %p31 = scmp.eq.s32.totalorder %s19, 1
      %p32 = por %p30, %p31
      %p33 = scmp.ne.s32.totalorder %s24, %s25
      %p34 = scmp.eq.s32.totalorder %s19, 0
      %p35 = por %p33, %p34
      %p36 = scmp.ne.s32.totalorder %s24, %s25
      %p37 = scmp.eq.s32.totalorder %s20, 1
      %p38 = por %p36, %p37
      %p40 = scmp.ne.s32.totalorder %s25, %s39
      %p41 = scmp.eq.s32.totalorder %s20, 0
      %p42 = por %p40, %p41
      %s43 = ssub.s32 %s14, %s21
      %p44 = scmp.eq.s32.totalorder %s43, 0
      %s46 = sadd.s32 %s45, 1
      %s47 = scalar_select %p44, %s45, %s46
      %p50 = pneg %p44
      %p51 = scmp.eq.s32.totalorder %s14, 1
      %p52 = por %p50, %p51
      %p53 = scmp.ne.s32.totalorder %s45, %s48
      %p54 = scmp.eq.s32.totalorder %s14, 0
      %p55 = por %p53, %p54
      %p56 = scmp.ne.s32.totalorder %s45, %s48
      %p57 = scmp.eq.s32.totalorder %s19, 1
      %p58 = por %p56, %p57
      %p59 = scmp.ne.s32.totalorder %s48, %s49
      %p60 = scmp.eq.s32.totalorder %s19, 0
      %p61 = por %p59, %p60
      %p62 = scmp.ne.s32.totalorder %s48, %s49
      %p63 = scmp.eq.s32.totalorder %s20, 1
      %p64 = por %p62, %p63
      %p66 = scmp.ne.s32.totalorder %s49, %s65
      %p67 = scmp.eq.s32.totalorder %s20, 0
      %p68 = por %p66, %p67
      %s69 = ssub.s32 %s14, %s21
      %p70 = scmp.eq.s32.totalorder %s69, 0
      %s72 = sadd.s32 %s71, 1
      %s73 = scalar_select %p70, %s71, %s72
      %p76 = pneg %p70
      %p77 = scmp.eq.s32.totalorder %s14, 1
      %p78 = por %p76, %p77
      %p79 = scmp.ne.s32.totalorder %s71, %s74
      %p80 = scmp.eq.s32.totalorder %s14, 0
      %p81 = por %p79, %p80
      %p82 = scmp.ne.s32.totalorder %s71, %s74
      %p83 = scmp.eq.s32.totalorder %s19, 1
      %p84 = por %p82, %p83
      %p85 = scmp.ne.s32.totalorder %s74, %s75
      %p86 = scmp.eq.s32.totalorder %s19, 0
      %p87 = por %p85, %p86
      %p88 = scmp.ne.s32.totalorder %s74, %s75
      %p89 = scmp.eq.s32.totalorder %s20, 1
      %p90 = por %p88, %p89
      %p92 = scmp.ne.s32.totalorder %s75, %s91
      %p93 = scmp.eq.s32.totalorder %s20, 0
      %p94 = por %p92, %p93
      %s95 = ssub.s32 %s14, %s21
      %p96 = scmp.eq.s32.totalorder %s95, 0
      %s98 = sadd.s32 %s97, 1
      %s99 = scalar_select %p96, %s97, %s98
      %p102 = pneg %p96
      %p103 = scmp.eq.s32.totalorder %s14, 1
      %p104 = por %p102, %p103
      %p105 = scmp.ne.s32.totalorder %s97, %s100
      %p106 = scmp.eq.s32.totalorder %s14, 0
      %p107 = por %p105, %p106
      %p108 = scmp.ne.s32.totalorder %s97, %s100
      %p109 = scmp.eq.s32.totalorder %s19, 1
      %p110 = por %p108, %p109
      %p111 = scmp.ne.s32.totalorder %s100, %s101
      %p112 = scmp.eq.s32.totalorder %s19, 0
      %p113 = por %p111, %p112
      %p114 = scmp.ne.s32.totalorder %s100, %s101
      %p115 = scmp.eq.s32.totalorder %s20, 1
      %p116 = por %p114, %p115
      %p118 = scmp.ne.s32.totalorder %s101, %s117
      %p119 = scmp.eq.s32.totalorder %s20, 0
      %p120 = por %p118, %p119
      %s121 = ssub.s32 %s14, %s21
      %p122 = scmp.eq.s32.totalorder %s121, 0
      %s124 = sadd.s32 %s123, 1
      %s125 = scalar_select %p122, %s123, %s124
      %p128 = pneg %p122
      %p129 = scmp.eq.s32.totalorder %s14, 1
      %p130 = por %p128, %p129
      %p131 = scmp.ne.s32.totalorder %s123, %s126
      %p132 = scmp.eq.s32.totalorder %s14, 0
      %p133 = por %p131, %p132
      %p134 = scmp.ne.s32.totalorder %s123, %s126
      %p135 = scmp.eq.s32.totalorder %s19, 1
      %p136 = por %p134, %p135
      %p137 = scmp.ne.s32.totalorder %s126, %s127
      %p138 = scmp.eq.s32.totalorder %s19, 0
      %p139 = por %p137, %p138
      %p140 = scmp.ne.s32.totalorder %s126, %s127
      %p141 = scmp.eq.s32.totalorder %s20, 1
      %p142 = por %p140, %p141
      %p144 = scmp.ne.s32.totalorder %s127, %s143
      %p145 = scmp.eq.s32.totalorder %s20, 0
      %p146 = por %p144, %p145
      %p147 = scmp.le.s32.totalorder 1, %s14
      %p148 = scmp.lt.s32.totalorder %s14, 3
      %p149 = pnand %p147, %p148
      %p150 = pneg %p149
      // Predicated region
      $region9: #{tpu_custom_call.1} parent=5 // pred_check
        _
      $region10: #{tpu_custom_call.1} parent=5 // pred_check_branch
        %152 = sbr.rel (%p149) target = $region12
      $region11: #{tpu_custom_call.1} parent=5 // pred_region
        %s153 = ssub.s32 %s14, 1
        // Predicated region
        $region13: #{tpu_custom_call.1} parent=11 // pred_check
          %p154 = pneg %p35
        $region14: #{tpu_custom_call.1} parent=11 // pred_check_branch
          %156 = sbr.rel (%p154) target = $region16
        $region15: #{tpu_custom_call.1} parent=11 // pred_region
          _
        $region16: #{tpu_custom_call.1} parent=11 // pred_fallthru
          _
      $region12: #{tpu_custom_call.1} parent=5 // pred_fallthru
        _
      %p157 = scmp.lt.s32.totalorder %s14, 2
      // Predicated region
      $region17: #{tpu_custom_call.1} parent=5 // pred_check
        %p158 = pneg %p157
      $region18: #{tpu_custom_call.1} parent=5 // pred_check_branch
        %160 = sbr.rel (%p158) target = $region20
      $region19: #{tpu_custom_call.1} parent=5 // pred_region
        // Predicated region
        $region21: #{tpu_custom_call.1} parent=19 // pred_check
          %p161 = pneg %p55
        $region22: #{tpu_custom_call.1} parent=19 // pred_check_branch
          %163 = sbr.rel (%p161) target = $region24
        $region23: #{tpu_custom_call.1} parent=19 // pred_region
          %s164 = smul.u32 16, %s14
          %p165 = scmp.lt.s32.totalorder %s164, 31
          %s166 = scalar_select %p165, %s164, 31
          %s167 = smul.addr %s166, 8
          %s168 = scalar_lea.vmem %s1, %s167
          %s169 = smul.u32 16, %s14
        $region24: #{tpu_custom_call.1} parent=19 // pred_fallthru
          _
        // Predicated region
        $region25: #{tpu_custom_call.1} parent=19 // pred_check
          %p170 = pneg %p81
        $region26: #{tpu_custom_call.1} parent=19 // pred_check_branch
          %172 = sbr.rel (%p170) target = $region28
        $region27: #{tpu_custom_call.1} parent=19 // pred_region
          %s173 = smul.u32 16, %s14
          %p174 = scmp.lt.s32.totalorder %s173, 31
          %s175 = scalar_select %p174, %s173, 31
          %s176 = smul.addr %s175, 8
          %s177 = scalar_lea.vmem %s2, %s176
          %s178 = smul.u32 16, %s14
        $region28: #{tpu_custom_call.1} parent=19 // pred_fallthru
          _
      $region20: #{tpu_custom_call.1} parent=5 // pred_fallthru
        _
      %p179 = scmp.le.s32.totalorder 1, %s14
      %p180 = scmp.lt.s32.totalorder %s14, 3
      %p181 = pnand %p179, %p180
      %p182 = pneg %p181
      // Predicated region
      $region29: #{tpu_custom_call.1} parent=5 // pred_check
        _
      $region30: #{tpu_custom_call.1} parent=5 // pred_check_branch
        %184 = sbr.rel (%p181) target = $region32
      $region31: #{tpu_custom_call.1} parent=5 // pred_region
        %s185 = ssub.s32 %s14, 1
        %p186 = pneg %p35
        %p187 = pneg %p32
        %s188 = smul.u32 16, %s19
        %p189 = scmp.lt.s32.totalorder %s188, 31
        %s190 = scalar_select %p189, %s188, 31
        %s191 = smul.addr %s190, 8
        %s192 = scalar_lea.vmem %s1, %s191
        %p193 = pneg %p61
        %p194 = pneg %p58
        %s195 = smul.u32 16, %s19
        %p196 = scmp.lt.s32.totalorder %s195, 31
        %s197 = scalar_select %p196, %s195, 31
        %s198 = smul.addr %s197, 8
        %s199 = scalar_lea.vmem %s2, %s198
        %p200 = pneg %p87
        %p201 = pneg %p84
        %p202 = pneg %p113
        %p203 = pneg %p110
        %s204 = sand.u32 %s100, 1
        %s205 = scalar_lea.sflag [#allocation3], %s204
        %s206 = sand.u32 %s100, 1
        %s207 = smul.addr %s206, 8
        %s208 = scalar_lea.vmem [#allocation2], %s207
        %p209 = pneg %p139
        %p210 = pneg %p136
        %s211 = smul.u32 16, %s19
        %p212 = scmp.lt.s32.totalorder %s211, 31
        %s213 = scalar_select %p212, %s211, 31
        %s214 = smul.addr %s213, 8
        %s215 = scalar_lea.vmem %s4, %s214
        %s216 = smul.u32 16, %s19
        %p217 = scmp.lt.s32.totalorder %s216, 31
        %s218 = scalar_select %p217, %s216, 31
        %s219 = smul.addr %s218, 8
        %s220 = scalar_lea.vmem %s1, %s219
        %s221 = smul.u32 16, %s19
        %s222 = smul.u32 16, %s19
        %p223 = scmp.lt.s32.totalorder %s222, 31
        %s224 = scalar_select %p223, %s222, 31
        %s225 = smul.addr %s224, 8
        %s226 = scalar_lea.vmem %s2, %s225
        %s227 = smul.u32 16, %s19
        %s228 = smul.u32 16, %s19
        %p229 = scmp.lt.s32.totalorder %s228, 31
        %s230 = scalar_select %p229, %s228, 31
        %s231 = smul.addr %s230, 8
        %s232 = scalar_lea.vmem %s4, %s231
        %s233 = smul.u32 16, %s19
        %v234 = vld [vmem:[%s0] sm:$0xff]
        %v235 = vld [vmem:[%s220] sm:$0xff]
        %v236 = vld [vmem:[%s220 + $0x8] sm:$0xff]
        %v237 = vld [vmem:[%s220 + $0x10] sm:$0xff]
        %v238 = vld [vmem:[%s220 + $0x18] sm:$0xff]
        %v239 = vld [vmem:[%s220 + $0x20] sm:$0xff]
        %v240 = vld [vmem:[%s220 + $0x28] sm:$0xff]
        %v241 = vld [vmem:[%s220 + $0x30] sm:$0xff]
        %v242 = vld [vmem:[%s220 + $0x38] sm:$0xff]
        %v243 = vld [vmem:[%s220 + $0x40] sm:$0xff]
        %v244 = vld [vmem:[%s220 + $0x48] sm:$0xff]
        %v245 = vld [vmem:[%s220 + $0x50] sm:$0xff]
        %v246 = vld [vmem:[%s220 + $0x58] sm:$0xff]
        %v247 = vld [vmem:[%s220 + $0x60] sm:$0xff]
        %v248 = vld [vmem:[%s220 + $0x68] sm:$0xff]
        %v249 = vld [vmem:[%s220 + $0x70] sm:$0xff]
        %v250 = vld [vmem:[%s220 + $0x78] sm:$0xff]
        %v251 = vld [vmem:[%s226] sm:$0xff]
        %v252 = vld [vmem:[%s226 + $0x8] sm:$0xff]
        %v253 = vld [vmem:[%s226 + $0x10] sm:$0xff]
        %v254 = vld [vmem:[%s226 + $0x18] sm:$0xff]
        %v255 = vld [vmem:[%s226 + $0x20] sm:$0xff]
        %v256 = vld [vmem:[%s226 + $0x28] sm:$0xff]
        %v257 = vld [vmem:[%s226 + $0x30] sm:$0xff]
        %v258 = vld [vmem:[%s226 + $0x38] sm:$0xff]
        %v259 = vld [vmem:[%s226 + $0x40] sm:$0xff]
        %v260 = vld [vmem:[%s226 + $0x48] sm:$0xff]
        %v261 = vld [vmem:[%s226 + $0x50] sm:$0xff]
        %v262 = vld [vmem:[%s226 + $0x58] sm:$0xff]
        %v263 = vld [vmem:[%s226 + $0x60] sm:$0xff]
        %v264 = vld [vmem:[%s226 + $0x68] sm:$0xff]
        %v265 = vld [vmem:[%s226 + $0x70] sm:$0xff]
        %v266 = vld [vmem:[%s226 + $0x78] sm:$0xff]
        %v267 = vmul.f32 %v234, %v234
        %vm268 = vcmask 523264
        %v269 = vsel %vm268, %v267, 0.0
        %270 = vadd.xlane.f32.xlu0 %v269
        %v271 = vpop.xlane.xlu0 %270
        %v272 = vrsqrt.pop %v271
        %v273 = vmin.f32 %v272, 1e+12
        %v274 = vmul.f32 %v235, %v235
        %v275 = vmul.f32 %v236, %v236
        %v276 = vmul.f32 %v237, %v237
        %v277 = vmul.f32 %v238, %v238
        %v278 = vmul.f32 %v239, %v239
        %v279 = vmul.f32 %v240, %v240
        %v280 = vmul.f32 %v241, %v241
        %v281 = vmul.f32 %v242, %v242
        %v282 = vmul.f32 %v243, %v243
        %v283 = vmul.f32 %v244, %v244
        %v284 = vmul.f32 %v245, %v245
        %v285 = vmul.f32 %v246, %v246
        %v286 = vmul.f32 %v247, %v247
        %v287 = vmul.f32 %v248, %v248
        %v288 = vmul.f32 %v249, %v249
        %v289 = vmul.f32 %v250, %v250
        %v290 = vsel %vm268, %v274, 0.0
        %291 = vadd.xlane.f32.xlu0 %v290
        %v292 = vpop.xlane.xlu0 %291
        %v293 = vsel %vm268, %v275, 0.0
        %294 = vadd.xlane.f32.xlu0 %v293
        %v295 = vpop.xlane.xlu0 %294
        %v296 = vsel %vm268, %v276, 0.0
        %297 = vadd.xlane.f32.xlu0 %v296
        %v298 = vpop.xlane.xlu0 %297
        %v299 = vsel %vm268, %v277, 0.0
        %300 = vadd.xlane.f32.xlu0 %v299
        %v301 = vpop.xlane.xlu0 %300
        %v302 = vsel %vm268, %v278, 0.0
        %303 = vadd.xlane.f32.xlu0 %v302
        %v304 = vpop.xlane.xlu0 %303
        %v305 = vsel %vm268, %v279, 0.0
        %306 = vadd.xlane.f32.xlu0 %v305
        %v307 = vpop.xlane.xlu0 %306
        %v308 = vsel %vm268, %v280, 0.0
        %309 = vadd.xlane.f32.xlu0 %v308
        %v310 = vpop.xlane.xlu0 %309
        %v311 = vsel %vm268, %v281, 0.0
        %312 = vadd.xlane.f32.xlu0 %v311
        %v313 = vpop.xlane.xlu0 %312
        %v314 = vsel %vm268, %v282, 0.0
        %315 = vadd.xlane.f32.xlu0 %v314
        %v316 = vpop.xlane.xlu0 %315
        %v317 = vsel %vm268, %v283, 0.0
        %318 = vadd.xlane.f32.xlu0 %v317
        %v319 = vpop.xlane.xlu0 %318
        %v320 = vsel %vm268, %v284, 0.0
        %321 = vadd.xlane.f32.xlu0 %v320
        %v322 = vpop.xlane.xlu0 %321
        %v323 = vsel %vm268, %v285, 0.0
        %324 = vadd.xlane.f32.xlu0 %v323
        %v325 = vpop.xlane.xlu0 %324
        %v326 = vsel %vm268, %v286, 0.0
        %327 = vadd.xlane.f32.xlu0 %v326
        %v328 = vpop.xlane.xlu0 %327
        %v329 = vsel %vm268, %v287, 0.0
        %330 = vadd.xlane.f32.xlu0 %v329
        %v331 = vpop.xlane.xlu0 %330
        %v332 = vsel %vm268, %v288, 0.0
        %333 = vadd.xlane.f32.xlu0 %v332
        %v334 = vpop.xlane.xlu0 %333
        %v335 = vsel %vm268, %v289, 0.0
        %336 = vadd.xlane.f32.xlu0 %v335
        %v337 = vpop.xlane.xlu0 %336
        %v338 = vrsqrt.pop %v292
        %v339 = vrsqrt.pop %v295
        %v340 = vrsqrt.pop %v298
        %v341 = vrsqrt.pop %v301
        %v342 = vrsqrt.pop %v304
        %v343 = vrsqrt.pop %v307
        %v344 = vrsqrt.pop %v310
        %v345 = vrsqrt.pop %v313
        %v346 = vrsqrt.pop %v316
        %v347 = vrsqrt.pop %v319
        %v348 = vrsqrt.pop %v322
        %v349 = vrsqrt.pop %v325
        %v350 = vrsqrt.pop %v328
        %v351 = vrsqrt.pop %v331
        %v352 = vrsqrt.pop %v334
        %v353 = vrsqrt.pop %v337
        %v354 = vmin.f32 %v338, 1e+12
        %v355 = vmin.f32 %v339, 1e+12
        %v356 = vmin.f32 %v340, 1e+12
        %v357 = vmin.f32 %v341, 1e+12
        %v358 = vmin.f32 %v342, 1e+12
        %v359 = vmin.f32 %v343, 1e+12
        %v360 = vmin.f32 %v344, 1e+12
        %v361 = vmin.f32 %v345, 1e+12
        %v362 = vmin.f32 %v346, 1e+12
        %v363 = vmin.f32 %v347, 1e+12
        %v364 = vmin.f32 %v348, 1e+12
        %v365 = vmin.f32 %v349, 1e+12
        %v366 = vmin.f32 %v350, 1e+12
        %v367 = vmin.f32 %v351, 1e+12
        %v368 = vmin.f32 %v352, 1e+12
        %v369 = vmin.f32 %v353, 1e+12
        %v370 = vmul.f32 %v234, %v273
        %v371 = vmul.f32 %v235, %v354
        %v372 = vmul.f32 %v236, %v355
        %v373 = vmul.f32 %v237, %v356
        %v374 = vmul.f32 %v238, %v357
        %v375 = vmul.f32 %v239, %v358
        %v376 = vmul.f32 %v240, %v359
        %v377 = vmul.f32 %v241, %v360
        %v378 = vmul.f32 %v242, %v361
        %v379 = vmul.f32 %v243, %v362
        %v380 = vmul.f32 %v244, %v363
        %v381 = vmul.f32 %v245, %v364
        %v382 = vmul.f32 %v246, %v365
        %v383 = vmul.f32 %v247, %v366
        %v384 = vmul.f32 %v248, %v367
        %v385 = vmul.f32 %v249, %v368
        %v386 = vmul.f32 %v250, %v369
        %v388 = vsel %vm268, %v370, 0
        %v391 = vsel %vm268, %v371, 0
        %v394 = vsel %vm268, %v372, 0
        %v397 = vsel %vm268, %v373, 0
        %v400 = vsel %vm268, %v374, 0
        %v403 = vsel %vm268, %v375, 0
        %v406 = vsel %vm268, %v376, 0
        %v409 = vsel %vm268, %v377, 0
        %v412 = vsel %vm268, %v378, 0
        %v415 = vsel %vm268, %v379, 0
        %v418 = vsel %vm268, %v380, 0
        %v421 = vsel %vm268, %v381, 0
        %v424 = vsel %vm268, %v382, 0
        %v427 = vsel %vm268, %v383, 0
        %v430 = vsel %vm268, %v384, 0
        %v433 = vsel %vm268, %v385, 0
        %v436 = vsel %vm268, %v386, 0
        %438 = vmatprep.subr.mxu0 0.0
        %439 = vmatpush1.xpose.msra.mxu0 %v391
        %440 = vmatprep.subr.mxu0 0.0
        %441 = vmatpush1.xpose.msra.mxu0 %v394
        %442 = vmatprep.subr.mxu0 0.0
        %443 = vmatpush1.xpose.msra.mxu0 %v397
        %444 = vmatprep.subr.mxu0 0.0
        %445 = vmatpush1.xpose.msra.mxu0 %v400
        %446 = vmatprep.subr.mxu0 0.0
        %447 = vmatpush1.xpose.msra.mxu0 %v403
        %448 = vmatprep.subr.mxu0 0.0
        %449 = vmatpush1.xpose.msra.mxu0 %v406
        %450 = vmatprep.subr.mxu0 0.0
        %451 = vmatpush1.xpose.msra.mxu0 %v409
        %452 = vmatprep.subr.mxu0 0.0
        %453 = vmatpush1.xpose.msra.mxu0 %v412
        %454 = vmatprep.subr.mxu0 0.0
        %455 = vmatpush1.xpose.msra.mxu0 %v415
        %456 = vmatprep.subr.mxu0 0.0
        %457 = vmatpush1.xpose.msra.mxu0 %v418
        %458 = vmatprep.subr.mxu0 0.0
        %459 = vmatpush1.xpose.msra.mxu0 %v421
        %460 = vmatprep.subr.mxu0 0.0
        %461 = vmatpush1.xpose.msra.mxu0 %v424
        %462 = vmatprep.subr.mxu0 0.0
        %463 = vmatpush1.xpose.msra.mxu0 %v427
        %464 = vmatprep.subr.mxu0 0.0
        %465 = vmatpush1.xpose.msra.mxu0 %v430
        %466 = vmatprep.subr.mxu0 0.0
        %467 = vmatpush1.xpose.msra.mxu0 %v433
        %468 = vmatprep.subr.mxu0 0.0
        %469 = vmatpush1.xpose.msra.mxu0 %v436
        %470 = vmatprep.subr.mxu0 0.0
        %471 = vmatpush1.xpose.msra.mxu0 0.0
        %472 = vmatprep.subr.mxu0 0.0
        %473 = vmatpush1.xpose.msra.mxu0 0.0
        %474 = vmatprep.subr.mxu0 0.0
        %475 = vmatpush1.xpose.msra.mxu0 0.0
        %476 = vmatprep.subr.mxu0 0.0
        %477 = vmatpush1.xpose.msra.mxu0 0.0
        %478 = vmatprep.subr.mxu0 0.0
        %479 = vmatpush1.xpose.msra.mxu0 0.0
        %480 = vmatprep.subr.mxu0 0.0
        %481 = vmatpush1.xpose.msra.mxu0 0.0
        %482 = vmatprep.subr.mxu0 0.0
        %483 = vmatpush1.xpose.msra.mxu0 0.0
        %484 = vmatprep.subr.mxu0 0.0
        %485 = vmatpush1.xpose.msra.mxu0 0.0
        %486 = vmatprep.subr.mxu0 0.0
        %487 = vmatpush1.xpose.msra.mxu0 0.0
        %488 = vmatprep.subr.mxu0 0.0
        %489 = vmatpush1.xpose.msra.mxu0 0.0
        %490 = vmatprep.subr.mxu0 0.0
        %491 = vmatpush1.xpose.msra.mxu0 0.0
        %492 = vmatprep.subr.mxu0 0.0
        %493 = vmatpush1.xpose.msra.mxu0 0.0
        %494 = vmatprep.subr.mxu0 0.0
        %495 = vmatpush1.xpose.msra.mxu0 0.0
        %496 = vmatprep.subr.mxu0 0.0
        %497 = vmatpush1.xpose.msra.mxu0 0.0
        %498 = vmatprep.subr.mxu0 0.0
        %499 = vmatpush1.xpose.msra.mxu0 0.0
        %500 = vmatprep.subr.mxu0 0.0
        %501 = vmatpush1.xpose.msra.mxu0 0.0
        %502 = vmatprep.mubr.f32.mxu0 0.0
        %503 = vmatmul.mubr.f32.gmra.mrb[0].mxu0 %v388
        %v504 = vpop.f32.mrb[0].mxu0
        %v505 = vadd.f32 0.0, %v504
        %v506 = vpop.f32.mrb[0].mxu0
        %507 = vdwg.mxu0
        %508 = vst [vmem:[%s208] sm:$0xff] %v505
        %v509 = vmul.f32 %v235, %v251
        %v510 = vmul.f32 %v236, %v252
        %v511 = vmul.f32 %v237, %v253
        %v512 = vmul.f32 %v238, %v254
        %v513 = vmul.f32 %v239, %v255
        %v514 = vmul.f32 %v240, %v256
        %v515 = vmul.f32 %v241, %v257
        %v516 = vmul.f32 %v242, %v258
        %v517 = vmul.f32 %v243, %v259
        %v518 = vmul.f32 %v244, %v260
        %v519 = vmul.f32 %v245, %v261
        %v520 = vmul.f32 %v246, %v262
        %v521 = vmul.f32 %v247, %v263
        %v522 = vmul.f32 %v248, %v264
        %v523 = vmul.f32 %v249, %v265
        %v524 = vmul.f32 %v250, %v266
        %v525 = vsel %vm268, %v509, 0.0
        %526 = vadd.xlane.f32.xlu0 %v525
        %v527 = vpop.xlane.xlu0 %526
        %v528 = vsel %vm268, %v510, 0.0
        %529 = vadd.xlane.f32.xlu0 %v528
        %v530 = vpop.xlane.xlu0 %529
        %v531 = vsel %vm268, %v511, 0.0
        %532 = vadd.xlane.f32.xlu0 %v531
        %v533 = vpop.xlane.xlu0 %532
        %v534 = vsel %vm268, %v512, 0.0
        %535 = vadd.xlane.f32.xlu0 %v534
        %v536 = vpop.xlane.xlu0 %535
        %v537 = vsel %vm268, %v513, 0.0
        %538 = vadd.xlane.f32.xlu0 %v537
        %v539 = vpop.xlane.xlu0 %538
        %v540 = vsel %vm268, %v514, 0.0
        %541 = vadd.xlane.f32.xlu0 %v540
        %v542 = vpop.xlane.xlu0 %541
        %v543 = vsel %vm268, %v515, 0.0
        %544 = vadd.xlane.f32.xlu0 %v543
        %v545 = vpop.xlane.xlu0 %544
        %v546 = vsel %vm268, %v516, 0.0
        %547 = vadd.xlane.f32.xlu0 %v546
        %v548 = vpop.xlane.xlu0 %547
        %v549 = vsel %vm268, %v517, 0.0
        %550 = vadd.xlane.f32.xlu0 %v549
        %v551 = vpop.xlane.xlu0 %550
        %v552 = vsel %vm268, %v518, 0.0
        %553 = vadd.xlane.f32.xlu0 %v552
        %v554 = vpop.xlane.xlu0 %553
        %v555 = vsel %vm268, %v519, 0.0
        %556 = vadd.xlane.f32.xlu0 %v555
        %v557 = vpop.xlane.xlu0 %556
        %v558 = vsel %vm268, %v520, 0.0
        %559 = vadd.xlane.f32.xlu0 %v558
        %v560 = vpop.xlane.xlu0 %559
        %v561 = vsel %vm268, %v521, 0.0
        %562 = vadd.xlane.f32.xlu0 %v561
        %v563 = vpop.xlane.xlu0 %562
        %v564 = vsel %vm268, %v522, 0.0
        %565 = vadd.xlane.f32.xlu0 %v564
        %v566 = vpop.xlane.xlu0 %565
        %v567 = vsel %vm268, %v523, 0.0
        %568 = vadd.xlane.f32.xlu0 %v567
        %v569 = vpop.xlane.xlu0 %568
        %v570 = vsel %vm268, %v524, 0.0
        %571 = vadd.xlane.f32.xlu0 %v570
        %v572 = vpop.xlane.xlu0 %571
        %v573 = vrsqrt.pop %v292
        %v574 = vmul.f32 %v292, %v573
        %vm575 = vcmp.eq.f32.partialorder %v292, inf
        %v576 = vsel %vm575, %v292, %v574
        %vm577 = vcmp.eq.f32.partialorder %v292, 0.0
        %v578 = vand.u32 %v292, 2147483648
        %v579 = vsel %vm577, %v578, %v576
        %v580 = vrsqrt.pop %v295
        %v581 = vmul.f32 %v295, %v580
        %vm582 = vcmp.eq.f32.partialorder %v295, inf
        %v583 = vsel %vm582, %v295, %v581
        %vm584 = vcmp.eq.f32.partialorder %v295, 0.0
        %v585 = vand.u32 %v295, 2147483648
        %v586 = vsel %vm584, %v585, %v583
        %v587 = vrsqrt.pop %v298
        %v588 = vmul.f32 %v298, %v587
        %vm589 = vcmp.eq.f32.partialorder %v298, inf
        %v590 = vsel %vm589, %v298, %v588
        %vm591 = vcmp.eq.f32.partialorder %v298, 0.0
        %v592 = vand.u32 %v298, 2147483648
        %v593 = vsel %vm591, %v592, %v590
        %v594 = vrsqrt.pop %v301
        %v595 = vmul.f32 %v301, %v594
        %vm596 = vcmp.eq.f32.partialorder %v301, inf
        %v597 = vsel %vm596, %v301, %v595
        %vm598 = vcmp.eq.f32.partialorder %v301, 0.0
        %v599 = vand.u32 %v301, 2147483648
        %v600 = vsel %vm598, %v599, %v597
        %v601 = vrsqrt.pop %v304
        %v602 = vmul.f32 %v304, %v601
        %vm603 = vcmp.eq.f32.partialorder %v304, inf
        %v604 = vsel %vm603, %v304, %v602
        %vm605 = vcmp.eq.f32.partialorder %v304, 0.0
        %v606 = vand.u32 %v304, 2147483648
        %v607 = vsel %vm605, %v606, %v604
        %v608 = vrsqrt.pop %v307
        %v609 = vmul.f32 %v307, %v608
        %vm610 = vcmp.eq.f32.partialorder %v307, inf
        %v611 = vsel %vm610, %v307, %v609
        %vm612 = vcmp.eq.f32.partialorder %v307, 0.0
        %v613 = vand.u32 %v307, 2147483648
        %v614 = vsel %vm612, %v613, %v611
        %v615 = vrsqrt.pop %v310
        %v616 = vmul.f32 %v310, %v615
        %vm617 = vcmp.eq.f32.partialorder %v310, inf
        %v618 = vsel %vm617, %v310, %v616
        %vm619 = vcmp.eq.f32.partialorder %v310, 0.0
        %v620 = vand.u32 %v310, 2147483648
        %v621 = vsel %vm619, %v620, %v618
        %v622 = vrsqrt.pop %v313
        %v623 = vmul.f32 %v313, %v622
        %vm624 = vcmp.eq.f32.partialorder %v313, inf
        %v625 = vsel %vm624, %v313, %v623
        %vm626 = vcmp.eq.f32.partialorder %v313, 0.0
        %v627 = vand.u32 %v313, 2147483648
        %v628 = vsel %vm626, %v627, %v625
        %v629 = vrsqrt.pop %v316
        %v630 = vmul.f32 %v316, %v629
        %vm631 = vcmp.eq.f32.partialorder %v316, inf
        %v632 = vsel %vm631, %v316, %v630
        %vm633 = vcmp.eq.f32.partialorder %v316, 0.0
        %v634 = vand.u32 %v316, 2147483648
        %v635 = vsel %vm633, %v634, %v632
        %v636 = vrsqrt.pop %v319
        %v637 = vmul.f32 %v319, %v636
        %vm638 = vcmp.eq.f32.partialorder %v319, inf
        %v639 = vsel %vm638, %v319, %v637
        %vm640 = vcmp.eq.f32.partialorder %v319, 0.0
        %v641 = vand.u32 %v319, 2147483648
        %v642 = vsel %vm640, %v641, %v639
        %v643 = vrsqrt.pop %v322
        %v644 = vmul.f32 %v322, %v643
        %vm645 = vcmp.eq.f32.partialorder %v322, inf
        %v646 = vsel %vm645, %v322, %v644
        %vm647 = vcmp.eq.f32.partialorder %v322, 0.0
        %v648 = vand.u32 %v322, 2147483648
        %v649 = vsel %vm647, %v648, %v646
        %v650 = vrsqrt.pop %v325
        %v651 = vmul.f32 %v325, %v650
        %vm652 = vcmp.eq.f32.partialorder %v325, inf
        %v653 = vsel %vm652, %v325, %v651
        %vm654 = vcmp.eq.f32.partialorder %v325, 0.0
        %v655 = vand.u32 %v325, 2147483648
        %v656 = vsel %vm654, %v655, %v653
        %v657 = vrsqrt.pop %v328
        %v658 = vmul.f32 %v328, %v657
        %vm659 = vcmp.eq.f32.partialorder %v328, inf
        %v660 = vsel %vm659, %v328, %v658
        %vm661 = vcmp.eq.f32.partialorder %v328, 0.0
        %v662 = vand.u32 %v328, 2147483648
        %v663 = vsel %vm661, %v662, %v660
        %v664 = vrsqrt.pop %v331
        %v665 = vmul.f32 %v331, %v664
        %vm666 = vcmp.eq.f32.partialorder %v331, inf
        %v667 = vsel %vm666, %v331, %v665
        %vm668 = vcmp.eq.f32.partialorder %v331, 0.0
        %v669 = vand.u32 %v331, 2147483648
        %v670 = vsel %vm668, %v669, %v667
        %v671 = vrsqrt.pop %v334
        %v672 = vmul.f32 %v334, %v671
        %vm673 = vcmp.eq.f32.partialorder %v334, inf
        %v674 = vsel %vm673, %v334, %v672
        %vm675 = vcmp.eq.f32.partialorder %v334, 0.0
        %v676 = vand.u32 %v334, 2147483648
        %v677 = vsel %vm675, %v676, %v674
        %v678 = vrsqrt.pop %v337
        %v679 = vmul.f32 %v337, %v678
        %vm680 = vcmp.eq.f32.partialorder %v337, inf
        %v681 = vsel %vm680, %v337, %v679
        %vm682 = vcmp.eq.f32.partialorder %v337, 0.0
        %v683 = vand.u32 %v337, 2147483648
        %v684 = vsel %vm682, %v683, %v681
        %v685 = vmax.f32 %v579, 1e-08
        %v686 = vmax.f32 %v586, 1e-08
        %v687 = vmax.f32 %v593, 1e-08
        %v688 = vmax.f32 %v600, 1e-08
        %v689 = vmax.f32 %v607, 1e-08
        %v690 = vmax.f32 %v614, 1e-08
        %v691 = vmax.f32 %v621, 1e-08
        %v692 = vmax.f32 %v628, 1e-08
        %v693 = vmax.f32 %v635, 1e-08
        %v694 = vmax.f32 %v642, 1e-08
        %v695 = vmax.f32 %v649, 1e-08
        %v696 = vmax.f32 %v656, 1e-08
        %v697 = vmax.f32 %v663, 1e-08
        %v698 = vmax.f32 %v670, 1e-08
        %v699 = vmax.f32 %v677, 1e-08
        %v700 = vmax.f32 %v684, 1e-08
        %v701 = vmul.f32 %v251, %v251
        %v702 = vmul.f32 %v252, %v252
        %v703 = vmul.f32 %v253, %v253
        %v704 = vmul.f32 %v254, %v254
        %v705 = vmul.f32 %v255, %v255
        %v706 = vmul.f32 %v256, %v256
        %v707 = vmul.f32 %v257, %v257
        %v708 = vmul.f32 %v258, %v258
        %v709 = vmul.f32 %v259, %v259
        %v710 = vmul.f32 %v260, %v260
        %v711 = vmul.f32 %v261, %v261
        %v712 = vmul.f32 %v262, %v262
        %v713 = vmul.f32 %v263, %v263
        %v714 = vmul.f32 %v264, %v264
        %v715 = vmul.f32 %v265, %v265
        %v716 = vmul.f32 %v266, %v266
        %v717 = vsel %vm268, %v701, 0.0
        %718 = vadd.xlane.f32.xlu0 %v717
        %v719 = vpop.xlane.xlu0 %718
        %v720 = vsel %vm268, %v702, 0.0
        %721 = vadd.xlane.f32.xlu0 %v720
        %v722 = vpop.xlane.xlu0 %721
        %v723 = vsel %vm268, %v703, 0.0
        %724 = vadd.xlane.f32.xlu0 %v723
        %v725 = vpop.xlane.xlu0 %724
        %v726 = vsel %vm268, %v704, 0.0
        %727 = vadd.xlane.f32.xlu0 %v726
        %v728 = vpop.xlane.xlu0 %727
        %v729 = vsel %vm268, %v705, 0.0
        %730 = vadd.xlane.f32.xlu0 %v729
        %v731 = vpop.xlane.xlu0 %730
        %v732 = vsel %vm268, %v706, 0.0
        %733 = vadd.xlane.f32.xlu0 %v732
        %v734 = vpop.xlane.xlu0 %733
        %v735 = vsel %vm268, %v707, 0.0
        %736 = vadd.xlane.f32.xlu0 %v735
        %v737 = vpop.xlane.xlu0 %736
        %v738 = vsel %vm268, %v708, 0.0
        %739 = vadd.xlane.f32.xlu0 %v738
        %v740 = vpop.xlane.xlu0 %739
        %v741 = vsel %vm268, %v709, 0.0
        %742 = vadd.xlane.f32.xlu0 %v741
        %v743 = vpop.xlane.xlu0 %742
        %v744 = vsel %vm268, %v710, 0.0
        %745 = vadd.xlane.f32.xlu0 %v744
        %v746 = vpop.xlane.xlu0 %745
        %v747 = vsel %vm268, %v711, 0.0
        %748 = vadd.xlane.f32.xlu0 %v747
        %v749 = vpop.xlane.xlu0 %748
        %v750 = vsel %vm268, %v712, 0.0
        %751 = vadd.xlane.f32.xlu0 %v750
        %v752 = vpop.xlane.xlu0 %751
        %v753 = vsel %vm268, %v713, 0.0
        %754 = vadd.xlane.f32.xlu0 %v753
        %v755 = vpop.xlane.xlu0 %754
        %v756 = vsel %vm268, %v714, 0.0
        %757 = vadd.xlane.f32.xlu0 %v756
        %v758 = vpop.xlane.xlu0 %757
        %v759 = vsel %vm268, %v715, 0.0
        %760 = vadd.xlane.f32.xlu0 %v759
        %v761 = vpop.xlane.xlu0 %760
        %v762 = vsel %vm268, %v716, 0.0
        %763 = vadd.xlane.f32.xlu0 %v762
        %v764 = vpop.xlane.xlu0 %763
        %v765 = vrsqrt.pop %v719
        %v766 = vmul.f32 %v719, %v765
        %vm767 = vcmp.eq.f32.partialorder %v719, inf
        %v768 = vsel %vm767, %v719, %v766
        %vm769 = vcmp.eq.f32.partialorder %v719, 0.0
        %v770 = vand.u32 %v719, 2147483648
        %v771 = vsel %vm769, %v770, %v768
        %v772 = vrsqrt.pop %v722
        %v773 = vmul.f32 %v722, %v772
        %vm774 = vcmp.eq.f32.partialorder %v722, inf
        %v775 = vsel %vm774, %v722, %v773
        %vm776 = vcmp.eq.f32.partialorder %v722, 0.0
        %v777 = vand.u32 %v722, 2147483648
        %v778 = vsel %vm776, %v777, %v775
        %v779 = vrsqrt.pop %v725
        %v780 = vmul.f32 %v725, %v779
        %vm781 = vcmp.eq.f32.partialorder %v725, inf
        %v782 = vsel %vm781, %v725, %v780
        %vm783 = vcmp.eq.f32.partialorder %v725, 0.0
        %v784 = vand.u32 %v725, 2147483648
        %v785 = vsel %vm783, %v784, %v782
        %v786 = vrsqrt.pop %v728
        %v787 = vmul.f32 %v728, %v786
        %vm788 = vcmp.eq.f32.partialorder %v728, inf
        %v789 = vsel %vm788, %v728, %v787
        %vm790 = vcmp.eq.f32.partialorder %v728, 0.0
        %v791 = vand.u32 %v728, 2147483648
        %v792 = vsel %vm790, %v791, %v789
        %v793 = vrsqrt.pop %v731
        %v794 = vmul.f32 %v731, %v793
        %vm795 = vcmp.eq.f32.partialorder %v731, inf
        %v796 = vsel %vm795, %v731, %v794
        %vm797 = vcmp.eq.f32.partialorder %v731, 0.0
        %v798 = vand.u32 %v731, 2147483648
        %v799 = vsel %vm797, %v798, %v796
        %v800 = vrsqrt.pop %v734
        %v801 = vmul.f32 %v734, %v800
        %vm802 = vcmp.eq.f32.partialorder %v734, inf
        %v803 = vsel %vm802, %v734, %v801
        %vm804 = vcmp.eq.f32.partialorder %v734, 0.0
        %v805 = vand.u32 %v734, 2147483648
        %v806 = vsel %vm804, %v805, %v803
        %v807 = vrsqrt.pop %v737
        %v808 = vmul.f32 %v737, %v807
        %vm809 = vcmp.eq.f32.partialorder %v737, inf
        %v810 = vsel %vm809, %v737, %v808
        %vm811 = vcmp.eq.f32.partialorder %v737, 0.0
        %v812 = vand.u32 %v737, 2147483648
        %v813 = vsel %vm811, %v812, %v810
        %v814 = vrsqrt.pop %v740
        %v815 = vmul.f32 %v740, %v814
        %vm816 = vcmp.eq.f32.partialorder %v740, inf
        %v817 = vsel %vm816, %v740, %v815
        %vm818 = vcmp.eq.f32.partialorder %v740, 0.0
        %v819 = vand.u32 %v740, 2147483648
        %v820 = vsel %vm818, %v819, %v817
        %v821 = vrsqrt.pop %v743
        %v822 = vmul.f32 %v743, %v821
        %vm823 = vcmp.eq.f32.partialorder %v743, inf
        %v824 = vsel %vm823, %v743, %v822
        %vm825 = vcmp.eq.f32.partialorder %v743, 0.0
        %v826 = vand.u32 %v743, 2147483648
        %v827 = vsel %vm825, %v826, %v824
        %v828 = vrsqrt.pop %v746
        %v829 = vmul.f32 %v746, %v828
        %vm830 = vcmp.eq.f32.partialorder %v746, inf
        %v831 = vsel %vm830, %v746, %v829
        %vm832 = vcmp.eq.f32.partialorder %v746, 0.0
        %v833 = vand.u32 %v746, 2147483648
        %v834 = vsel %vm832, %v833, %v831
        %v835 = vrsqrt.pop %v749
        %v836 = vmul.f32 %v749, %v835
        %vm837 = vcmp.eq.f32.partialorder %v749, inf
        %v838 = vsel %vm837, %v749, %v836
        %vm839 = vcmp.eq.f32.partialorder %v749, 0.0
        %v840 = vand.u32 %v749, 2147483648
        %v841 = vsel %vm839, %v840, %v838
        %v842 = vrsqrt.pop %v752
        %v843 = vmul.f32 %v752, %v842
        %vm844 = vcmp.eq.f32.partialorder %v752, inf
        %v845 = vsel %vm844, %v752, %v843
        %vm846 = vcmp.eq.f32.partialorder %v752, 0.0
        %v847 = vand.u32 %v752, 2147483648
        %v848 = vsel %vm846, %v847, %v845
        %v849 = vrsqrt.pop %v755
        %v850 = vmul.f32 %v755, %v849
        %vm851 = vcmp.eq.f32.partialorder %v755, inf
        %v852 = vsel %vm851, %v755, %v850
        %vm853 = vcmp.eq.f32.partialorder %v755, 0.0
        %v854 = vand.u32 %v755, 2147483648
        %v855 = vsel %vm853, %v854, %v852
        %v856 = vrsqrt.pop %v758
        %v857 = vmul.f32 %v758, %v856
        %vm858 = vcmp.eq.f32.partialorder %v758, inf
        %v859 = vsel %vm858, %v758, %v857
        %vm860 = vcmp.eq.f32.partialorder %v758, 0.0
        %v861 = vand.u32 %v758, 2147483648
        %v862 = vsel %vm860, %v861, %v859
        %v863 = vrsqrt.pop %v761
        %v864 = vmul.f32 %v761, %v863
        %vm865 = vcmp.eq.f32.partialorder %v761, inf
        %v866 = vsel %vm865, %v761, %v864
        %vm867 = vcmp.eq.f32.partialorder %v761, 0.0
        %v868 = vand.u32 %v761, 2147483648
        %v869 = vsel %vm867, %v868, %v866
        %v870 = vrsqrt.pop %v764
        %v871 = vmul.f32 %v764, %v870
        %vm872 = vcmp.eq.f32.partialorder %v764, inf
        %v873 = vsel %vm872, %v764, %v871
        %vm874 = vcmp.eq.f32.partialorder %v764, 0.0
        %v875 = vand.u32 %v764, 2147483648
        %v876 = vsel %vm874, %v875, %v873
        %v877 = vmax.f32 %v771, 1e-08
        %v878 = vmax.f32 %v778, 1e-08
        %v879 = vmax.f32 %v785, 1e-08
        %v880 = vmax.f32 %v792, 1e-08
        %v881 = vmax.f32 %v799, 1e-08
        %v882 = vmax.f32 %v806, 1e-08
        %v883 = vmax.f32 %v813, 1e-08
        %v884 = vmax.f32 %v820, 1e-08
        %v885 = vmax.f32 %v827, 1e-08
        %v886 = vmax.f32 %v834, 1e-08
        %v887 = vmax.f32 %v841, 1e-08
        %v888 = vmax.f32 %v848, 1e-08
        %v889 = vmax.f32 %v855, 1e-08
        %v890 = vmax.f32 %v862, 1e-08
        %v891 = vmax.f32 %v869, 1e-08
        %v892 = vmax.f32 %v876, 1e-08
        %v893 = vmul.f32 %v685, %v877
        %v894 = vmul.f32 %v686, %v878
        %v895 = vmul.f32 %v687, %v879
        %v896 = vmul.f32 %v688, %v880
        %v897 = vmul.f32 %v689, %v881
        %v898 = vmul.f32 %v690, %v882
        %v899 = vmul.f32 %v691, %v883
        %v900 = vmul.f32 %v692, %v884
        %v901 = vmul.f32 %v693, %v885
        %v902 = vmul.f32 %v694, %v886
        %v903 = vmul.f32 %v695, %v887
        %v904 = vmul.f32 %v696, %v888
        %v905 = vmul.f32 %v697, %v889
        %v906 = vmul.f32 %v698, %v890
        %v907 = vmul.f32 %v699, %v891
        %v908 = vmul.f32 %v700, %v892
        %v909 = vrcp.pop %v893
        %v910 = vmul.f32 %v527, %v909
        %v911 = vrcp.pop %v894
        %v912 = vmul.f32 %v530, %v911
        %v913 = vrcp.pop %v895
        %v914 = vmul.f32 %v533, %v913
        %v915 = vrcp.pop %v896
        %v916 = vmul.f32 %v536, %v915
        %v917 = vrcp.pop %v897
        %v918 = vmul.f32 %v539, %v917
        %v919 = vrcp.pop %v898
        %v920 = vmul.f32 %v542, %v919
        %v921 = vrcp.pop %v899
        %v922 = vmul.f32 %v545, %v921
        %v923 = vrcp.pop %v900
        %v924 = vmul.f32 %v548, %v923
        %v925 = vrcp.pop %v901
        %v926 = vmul.f32 %v551, %v925
        %v927 = vrcp.pop %v902
        %v928 = vmul.f32 %v554, %v927
        %v929 = vrcp.pop %v903
        %v930 = vmul.f32 %v557, %v929
        %v931 = vrcp.pop %v904
        %v932 = vmul.f32 %v560, %v931
        %v933 = vrcp.pop %v905
        %v934 = vmul.f32 %v563, %v933
        %v935 = vrcp.pop %v906
        %v936 = vmul.f32 %v566, %v935
        %v937 = vrcp.pop %v907
        %v938 = vmul.f32 %v569, %v937
        %v939 = vrcp.pop %v908
        %v940 = vmul.f32 %v572, %v939
        %vm941 = vcmask 7168
        %942 = vst.msk [vmem:[%s232] sm:$0xff] %vm941, %v910
        %943 = vst.msk [vmem:[%s232 + $0x8] sm:$0xff] %vm941, %v912
        %944 = vst.msk [vmem:[%s232 + $0x10] sm:$0xff] %vm941, %v914
        %945 = vst.msk [vmem:[%s232 + $0x18] sm:$0xff] %vm941, %v916
        %946 = vst.msk [vmem:[%s232 + $0x20] sm:$0xff] %vm941, %v918
        %947 = vst.msk [vmem:[%s232 + $0x28] sm:$0xff] %vm941, %v920
        %948 = vst.msk [vmem:[%s232 + $0x30] sm:$0xff] %vm941, %v922
        %949 = vst.msk [vmem:[%s232 + $0x38] sm:$0xff] %vm941, %v924
        %950 = vst.msk [vmem:[%s232 + $0x40] sm:$0xff] %vm941, %v926
        %951 = vst.msk [vmem:[%s232 + $0x48] sm:$0xff] %vm941, %v928
        %952 = vst.msk [vmem:[%s232 + $0x50] sm:$0xff] %vm941, %v930
        %953 = vst.msk [vmem:[%s232 + $0x58] sm:$0xff] %vm941, %v932
        %954 = vst.msk [vmem:[%s232 + $0x60] sm:$0xff] %vm941, %v934
        %955 = vst.msk [vmem:[%s232 + $0x68] sm:$0xff] %vm941, %v936
        %956 = vst.msk [vmem:[%s232 + $0x70] sm:$0xff] %vm941, %v938
        %957 = vst.msk [vmem:[%s232 + $0x78] sm:$0xff] %vm941, %v940
        %s958 = sand.u32 %s100, 1
        %s959 = scalar_lea.sflag [#allocation3], %s958
        %s960 = sand.u32 %s100, 1
        %s961 = smul.addr %s960, 8
        %s962 = scalar_lea.vmem [#allocation2], %s961
        %s963 = smul.u32 16, %s19
        %p964 = scmp.lt.s32.totalorder %s963, 31
        %s965 = scalar_select %p964, %s963, 31
        %s966 = smul.addr %s965, 8
        %s967 = scalar_lea.vmem %s4, %s966
        // Predicated region
        $region33: #{tpu_custom_call.1} parent=31 // pred_check
          %p968 = pneg %p110
        $region34: #{tpu_custom_call.1} parent=31 // pred_check_branch
          %970 = sbr.rel (%p968) target = $region36
        $region35: #{tpu_custom_call.1} parent=31 // pred_region
          %s972 = ssub.s32 128, 128
          %973 = vsyncadd %s959, %s972
          %s974 = smul.addr %s19, 128
          %s975 = scalar_lea.hbm %s3, %s974
          %s977 = sshll.u32 %s962, 4
          %s978 = int_to_ptr.vmem [resolvable:$true] %s977
          %980 = dma.vmem_to_hbm [thread:$0]  %s978, 128, %s975, %s959
        $region36: #{tpu_custom_call.1} parent=31 // pred_fallthru
          _
        // Predicated region
        $region37: #{tpu_custom_call.1} parent=31 // pred_check
          %p981 = pneg %p136
        $region38: #{tpu_custom_call.1} parent=31 // pred_check_branch
          %983 = sbr.rel (%p981) target = $region40
        $region39: #{tpu_custom_call.1} parent=31 // pred_region
          %s984 = smul.u32 16, %s19
        $region40: #{tpu_custom_call.1} parent=31 // pred_fallthru
          _
      $region32: #{tpu_custom_call.1} parent=5 // pred_fallthru
        _
      %p985 = scmp.le.s32.totalorder 2, %s14
      // Predicated region
      $region41: #{tpu_custom_call.1} parent=5 // pred_check
        %p986 = pneg %p985
      $region42: #{tpu_custom_call.1} parent=5 // pred_check_branch
        %988 = sbr.rel (%p986) target = $region44
      $region43: #{tpu_custom_call.1} parent=5 // pred_region
        %s989 = ssub.s32 %s14, 2
        // Predicated region
        $region45: #{tpu_custom_call.1} parent=43 // pred_check
          %p990 = pneg %p116
        $region46: #{tpu_custom_call.1} parent=43 // pred_check_branch
          %992 = sbr.rel (%p990) target = $region48
        $region47: #{tpu_custom_call.1} parent=43 // pred_region
          %s993 = sand.u32 %s101, 1
          %s994 = scalar_lea.sflag [#allocation3], %s993
          %s995 = sand.u32 %s101, 1
          %s996 = smul.addr %s995, 8
          %s997 = scalar_lea.vmem [#allocation2], %s996
          %998 = dma.done %s994, 128
        $region48: #{tpu_custom_call.1} parent=43 // pred_fallthru
          _
        // Predicated region
        $region49: #{tpu_custom_call.1} parent=43 // pred_check
          %p999 = pneg %p142
        $region50: #{tpu_custom_call.1} parent=43 // pred_check_branch
          %1001 = sbr.rel (%p999) target = $region52
        $region51: #{tpu_custom_call.1} parent=43 // pred_region
          %s1002 = smul.u32 16, %s20
          %p1003 = scmp.lt.s32.totalorder %s1002, 31
          %s1004 = scalar_select %p1003, %s1002, 31
          %s1005 = smul.addr %s1004, 8
          %s1006 = scalar_lea.vmem %s4, %s1005
        $region52: #{tpu_custom_call.1} parent=43 // pred_fallthru
          _
      $region44: #{tpu_custom_call.1} parent=5 // pred_fallthru
        _
    $region6: #{tpu_custom_call.1} parent=1 // loop_footer
      %s18 = sadd.s32 1, %s14
    $region7: #{tpu_custom_call.1} parent=1 // loop_footer_branch
      %13 = sbr.rel target = $region3
    $region8: #{tpu_custom_call.1} parent=1 // loop_exit
      _
    %1007 = vsyncpa [#allocation3], 1
    %s1008 = scalar_lea.sflag [#allocation3], 1
    %1009 = vsyncpa %s1008, 1

</llo_original>
